<compile_context>
chip_gen: v5e
topology: v5e:2x2
jax: 0.10.0
libtpu: 0.0.40
codegen_flags: <defaults>
</compile_context>

<pallas_src>
import functools

import jax
import jax.numpy as jnp
from jax.experimental import pallas as pl
from jax.experimental.pallas import tpu as pltpu

NOISE_DIM = 10
OUTPUT_DIM = 96
H1 = 128
H2 = 256

SUBLANE = 16            # bf16 sublane packing; batch tiles aligned to this
DEFAULT_TB_MAX = 2048   # safe under v5e's 16 MiB scoped-VMEM default; sweep 2048/4096 on v6e/v7x


def _round_up(x, m):
    return (x + m - 1) // m * m


def _choose_tiling(batch, tb_max):
    """Pick (tb, padded_batch): near-divisor tiling with >=2 steps when possible."""
    bp = _round_up(batch, SUBLANE)
    n_steps = max(2, pl.cdiv(bp, tb_max))           # >=2 -> both v7x TCs get work
    tb = _round_up(pl.cdiv(bp, n_steps), SUBLANE)   # near-divisor: waste < SUBLANE*steps rows
    bp = _round_up(bp, tb)
    return tb, bp


def generator_kernel(x_ref, w1_ref, b1_ref, w2_ref, b2_ref, w3_ref, b3_ref, o_ref):
    # x is already bf16 (cast in the wrapper); MXU matmuls accumulate in f32,
    # bias/ReLU/sigmoid run in f32.
    x = x_ref[...]

    # Linear(noise_dim -> 128) + ReLU
    h1 = jnp.dot(x, w1_ref[...], preferred_element_type=jnp.float32) + b1_ref[...]
    h1 = jnp.maximum(h1, 0.0).astype(jnp.bfloat16)

    # Linear(128 -> 256) + ReLU
    h2 = jnp.dot(h1, w2_ref[...], preferred_element_type=jnp.float32) + b2_ref[...]
    h2 = jnp.maximum(h2, 0.0).astype(jnp.bfloat16)

    # Linear(256 -> 96) + Sigmoid; reciprocal on the EUP slot (approx vrcp).
    logits = jnp.dot(h2, w3_ref[...], preferred_element_type=jnp.float32) + b3_ref[...]
    sig = pl.reciprocal(1.0 + jnp.exp(-logits), approx=True)
    o_ref[...] = sig.astype(o_ref.dtype)


@functools.partial(jax.jit, static_argnames=("tb", "out_dtype"))
def _generator_forward_padded(x_bf16, kparams, tb, out_dtype):
    w1, b1, w2, b2, w3, b3 = kparams
    bp = x_bf16.shape[0]
    grid = (bp // tb,)
    return pl.pallas_call(
        generator_kernel,
        out_shape=jax.ShapeDtypeStruct((bp, OUTPUT_DIM), out_dtype),
        grid=grid,
        in_specs=[
            pl.BlockSpec((tb, NOISE_DIM), lambda i: (i, 0)),      # x: tiled over batch
            pl.BlockSpec((NOISE_DIM, H1), lambda i: (0, 0)),      # grid-invariant weights:
            pl.BlockSpec((1, H1), lambda i: (0, 0)),              # constant block index =>
            pl.BlockSpec((H1, H2), lambda i: (0, 0)),             # no re-DMA across steps
            pl.BlockSpec((1, H2), lambda i: (0, 0)),
            pl.BlockSpec((H2, OUTPUT_DIM), lambda i: (0, 0)),
            pl.BlockSpec((1, OUTPUT_DIM), lambda i: (0, 0)),
        ],
        out_specs=pl.BlockSpec((tb, OUTPUT_DIM), lambda i: (i, 0)),
        compiler_params=pltpu.CompilerParams(
            dimension_semantics=("parallel",),   # shard batch tiles across TCs (v7x)
        ),
    )(x_bf16, w1, b1, w2, b2, w3, b3)


def generator_forward(noise, kparams, *, tb_max=DEFAULT_TB_MAX, out_dtype=jnp.float32):
    """noise: [B, noise_dim] float32 -> [B, output_dim] (out_dtype, default f32)."""
    batch = noise.shape[0]
    tb, bp = _choose_tiling(batch, tb_max)
    x = noise.astype(jnp.bfloat16)          # halve x DMA + VMEM tile
    if bp != batch:
        x = jnp.pad(x, ((0, bp - batch), (0, 0)))
    out = _generator_forward_padded(x, kparams, tb, out_dtype)
    if bp != batch:
        out = out[:batch]                   # only trims <16 padded rows, not columns
    return out


def init_params(key):
    """f32 params matching nn.Linear init (weights stored transposed [in, out];
    biases kept [1, out] for clean 2D broadcast)."""
    ks = jax.random.split(key, 6)

    def linear(kw, kb, fan_in, fan_out):
        bound = 1.0 / jnp.sqrt(float(fan_in))
        w = jax.random.uniform(kw, (fan_in, fan_out), jnp.float32, -bound, bound)
        b = jax.random.uniform(kb, (1, fan_out), jnp.float32, -bound, bound)
        return w, b

    w1, b1 = linear(ks[0], ks[1], NOISE_DIM, H1)
    w2, b2 = linear(ks[2], ks[3], H1, H2)
    w3, b3 = linear(ks[4], ks[5], H2, OUTPUT_DIM)
    return (w1, b1, w2, b2, w3, b3)


def prepare_kernel_params(params):
    """Cast weights to bf16 (MXU-native); keep biases f32 for the f32 epilogue."""
    w1, b1, w2, b2, w3, b3 = params
    return (
        w1.astype(jnp.bfloat16), b1.astype(jnp.float32),
        w2.astype(jnp.bfloat16), b2.astype(jnp.float32),
        w3.astype(jnp.bfloat16), b3.astype(jnp.float32),
    )


def reference_forward(noise, params):
    w1, b1, w2, b2, w3, b3 = params
    h1 = jnp.maximum(noise @ w1 + b1, 0.0)
    h2 = jnp.maximum(h1 @ w2 + b2, 0.0)
    return jax.nn.sigmoid(h2 @ w3 + b3)


if __name__ == "__main__":
    key = jax.random.PRNGKey(0)
    k_noise, k_params = jax.random.split(key)

    params = init_params(k_params)
    kparams = prepare_kernel_params(params)

    # Small case (batch=4): pads to one 16-row tile, single grid step.
    batch = 4
    noise = jax.random.normal(k_noise, (batch, NOISE_DIM), dtype=jnp.float32)
    out = jax.block_until_ready(generator_forward(noise, kparams))
    ref = reference_forward(noise, params)
    assert out.shape == (batch, OUTPUT_DIM), out.shape
    # bf16 matmul inputs (f32 accumulation) + approx reciprocal -> loosened tolerance.
    assert jnp.allclose(out, ref, atol=1e-2, rtol=1e-2), "mismatch vs reference (B=4)"

    # Multi-step grid + batch padding path (batch=20 -> tb=16, 2 grid steps).
    batch2 = 20
    noise2 = jax.random.normal(jax.random.PRNGKey(1), (batch2, NOISE_DIM), jnp.float32)
    out2 = jax.block_until_ready(generator_forward(noise2, kparams))
    ref2 = reference_forward(noise2, params)
    assert out2.shape == (batch2, OUTPUT_DIM), out2.shape
    assert jnp.allclose(out2, ref2, atol=1e-2, rtol=1e-2), "mismatch vs reference (B=20)"

    # Optional bf16 output path (halves the dominant HBM stream).
    out3 = jax.block_until_ready(
        generator_forward(noise2, kparams, out_dtype=jnp.bfloat16))
    assert out3.shape == (batch2, OUTPUT_DIM) and out3.dtype == jnp.bfloat16
    assert jnp.allclose(out3.astype(jnp.float32), ref2, atol=2e-2, rtol=2e-2), \
        "mismatch vs reference (bf16 out)"

    print("KERNEL_OK")
</pallas_src>

<mosaic_0001>
module attributes {stable_mosaic.version = 11 : i64} {
  func.func @generator_kernel(%arg0: i32, %arg1: memref<16x10xbf16, #tpu.memory_space<vmem>>, %arg2: memref<10x128xbf16, #tpu.memory_space<vmem>>, %arg3: memref<1x128xf32, #tpu.memory_space<vmem>>, %arg4: memref<128x256xbf16, #tpu.memory_space<vmem>>, %arg5: memref<1x256xf32, #tpu.memory_space<vmem>>, %arg6: memref<256x96xbf16, #tpu.memory_space<vmem>>, %arg7: memref<1x96xf32, #tpu.memory_space<vmem>>, %arg8: memref<16x96xf32, #tpu.memory_space<vmem>>) attributes {dimension_semantics = [#tpu.dimension_semantics<parallel>], iteration_bounds = array<i64: 1>, scalar_prefetch = 0 : i64, scratch_operands = 0 : i64, tpu.core_type = #tpu.core_type<tc>, window_params = [{transform_indices = @transform_0, window_bounds = array<i64: 16, 10>}, {pipeline_mode = #tpu.pipeline_mode<synchronous>, transform_indices = @transform_1, window_bounds = array<i64: 10, 128>}, {pipeline_mode = #tpu.pipeline_mode<synchronous>, transform_indices = @transform_2, window_bounds = array<i64: 1, 128>}, {pipeline_mode = #tpu.pipeline_mode<synchronous>, transform_indices = @transform_3, window_bounds = array<i64: 128, 256>}, {pipeline_mode = #tpu.pipeline_mode<synchronous>, transform_indices = @transform_4, window_bounds = array<i64: 1, 256>}, {pipeline_mode = #tpu.pipeline_mode<synchronous>, transform_indices = @transform_5, window_bounds = array<i64: 256, 96>}, {pipeline_mode = #tpu.pipeline_mode<synchronous>, transform_indices = @transform_6, window_bounds = array<i64: 1, 96>}, {transform_indices = @transform_7, window_bounds = array<i64: 16, 96>}]} {
    %c0 = arith.constant 0 : index
    %c0_0 = arith.constant 0 : index
    %0 = vector.load %arg1[%c0, %c0_0] : memref<16x10xbf16, #tpu.memory_space<vmem>>, vector<16x10xbf16>
    %c0_1 = arith.constant 0 : index
    %c0_2 = arith.constant 0 : index
    %1 = vector.load %arg2[%c0_1, %c0_2] : memref<10x128xbf16, #tpu.memory_space<vmem>>, vector<10x128xbf16>
    %cst = arith.constant dense<0.000000e+00> : vector<16x128xf32>
    %2 = tpu.matmul %0, %1, %cst {dimension_numbers = #tpu.dot_dimension_numbers<[1], [0], [0], [1], [0, 0, 1, 1], [], []>} : vector<16x10xbf16>, vector<10x128xbf16>, vector<16x128xf32> -> vector<16x128xf32>
    %c0_3 = arith.constant 0 : index
    %c0_4 = arith.constant 0 : index
    %3 = vector.load %arg3[%c0_3, %c0_4] : memref<1x128xf32, #tpu.memory_space<vmem>>, vector<1x128xf32>
    %4 = vector.broadcast %3 : vector<1x128xf32> to vector<16x128xf32>
    %5 = arith.addf %2, %4 : vector<16x128xf32>
    %cst_5 = arith.constant 0.000000e+00 : f32
    %6 = vector.broadcast %cst_5 : f32 to vector<16x128xf32>
    %7 = arith.maximumf %5, %6 : vector<16x128xf32>
    %8 = arith.truncf %7 : vector<16x128xf32> to vector<16x128xbf16>
    %c0_6 = arith.constant 0 : index
    %c0_7 = arith.constant 0 : index
    %9 = vector.load %arg4[%c0_6, %c0_7] : memref<128x256xbf16, #tpu.memory_space<vmem>>, vector<128x256xbf16>
    %cst_8 = arith.constant dense<0.000000e+00> : vector<16x256xf32>
    %10 = tpu.matmul %8, %9, %cst_8 {dimension_numbers = #tpu.dot_dimension_numbers<[1], [0], [0], [1], [0, 0, 1, 1], [], []>} : vector<16x128xbf16>, vector<128x256xbf16>, vector<16x256xf32> -> vector<16x256xf32>
    %c0_9 = arith.constant 0 : index
    %c0_10 = arith.constant 0 : index
    %11 = vector.load %arg5[%c0_9, %c0_10] : memref<1x256xf32, #tpu.memory_space<vmem>>, vector<1x256xf32>
    %12 = vector.broadcast %11 : vector<1x256xf32> to vector<16x256xf32>
    %13 = arith.addf %10, %12 : vector<16x256xf32>
    %cst_11 = arith.constant 0.000000e+00 : f32
    %14 = vector.broadcast %cst_11 : f32 to vector<16x256xf32>
    %15 = arith.maximumf %13, %14 : vector<16x256xf32>
    %16 = arith.truncf %15 : vector<16x256xf32> to vector<16x256xbf16>
    %c0_12 = arith.constant 0 : index
    %c0_13 = arith.constant 0 : index
    %17 = vector.load %arg6[%c0_12, %c0_13] : memref<256x96xbf16, #tpu.memory_space<vmem>>, vector<256x96xbf16>
    %cst_14 = arith.constant dense<0.000000e+00> : vector<16x96xf32>
    %18 = tpu.matmul %16, %17, %cst_14 {dimension_numbers = #tpu.dot_dimension_numbers<[1], [0], [0], [1], [0, 0, 1, 1], [], []>} : vector<16x256xbf16>, vector<256x96xbf16>, vector<16x96xf32> -> vector<16x96xf32>
    %c0_15 = arith.constant 0 : index
    %c0_16 = arith.constant 0 : index
    %19 = vector.load %arg7[%c0_15, %c0_16] : memref<1x96xf32, #tpu.memory_space<vmem>>, vector<1x96xf32>
    %20 = vector.broadcast %19 : vector<1x96xf32> to vector<16x96xf32>
    %21 = arith.addf %18, %20 : vector<16x96xf32>
    %cst_17 = arith.constant 0.000000e+00 : f32
    %22 = vector.broadcast %cst_17 : f32 to vector<16x96xf32>
    %23 = arith.subf %22, %21 : vector<16x96xf32>
    %24 = math.exp %23 : vector<16x96xf32>
    %cst_18 = arith.constant 1.000000e+00 : f32
    %25 = vector.broadcast %cst_18 : f32 to vector<16x96xf32>
    %26 = arith.addf %25, %24 : vector<16x96xf32>
    %27 = tpu.reciprocal %26 {approx = true} : vector<16x96xf32> -> vector<16x96xf32>
    %c0_19 = arith.constant 0 : index
    %c0_20 = arith.constant 0 : index
    %28 = vector.load %arg8[%c0_19, %c0_20] : memref<16x96xf32, #tpu.memory_space<vmem>>, vector<16x96xf32>
    tpu.vector_store %arg8[%c0_19, %c0_20], %27 {strides = array<i32>} : memref<16x96xf32, #tpu.memory_space<vmem>>, vector<16x96xf32>,
    return
  }
  func.func @transform_0(%arg0: i32) -> (i32, i32) {
    %c0_i32 = arith.constant 0 : i32
    %c0_i32_0 = arith.constant 0 : i32
    return %arg0, %c0_i32 : i32, i32
  }
  func.func @transform_1(%arg0: i32) -> (i32, i32) {
    %c0_i32 = arith.constant 0 : i32
    %c0_i32_0 = arith.constant 0 : i32
    %c0_i32_1 = arith.constant 0 : i32
    return %c0_i32, %c0_i32_0 : i32, i32
  }
  func.func @transform_2(%arg0: i32) -> (i32, i32) {
    %c0_i32 = arith.constant 0 : i32
    %c0_i32_0 = arith.constant 0 : i32
    %c0_i32_1 = arith.constant 0 : i32
    return %c0_i32, %c0_i32_0 : i32, i32
  }
  func.func @transform_3(%arg0: i32) -> (i32, i32) {
    %c0_i32 = arith.constant 0 : i32
    %c0_i32_0 = arith.constant 0 : i32
    %c0_i32_1 = arith.constant 0 : i32
    return %c0_i32, %c0_i32_0 : i32, i32
  }
  func.func @transform_4(%arg0: i32) -> (i32, i32) {
    %c0_i32 = arith.constant 0 : i32
    %c0_i32_0 = arith.constant 0 : i32
    %c0_i32_1 = arith.constant 0 : i32
    return %c0_i32, %c0_i32_0 : i32, i32
  }
  func.func @transform_5(%arg0: i32) -> (i32, i32) {
    %c0_i32 = arith.constant 0 : i32
    %c0_i32_0 = arith.constant 0 : i32
    %c0_i32_1 = arith.constant 0 : i32
    return %c0_i32, %c0_i32_0 : i32, i32
  }
  func.func @transform_6(%arg0: i32) -> (i32, i32) {
    %c0_i32 = arith.constant 0 : i32
    %c0_i32_0 = arith.constant 0 : i32
    %c0_i32_1 = arith.constant 0 : i32
    return %c0_i32, %c0_i32_0 : i32, i32
  }
  func.func @transform_7(%arg0: i32) -> (i32, i32) {
    %c0_i32 = arith.constant 0 : i32
    %c0_i32_0 = arith.constant 0 : i32
    return %arg0, %c0_i32 : i32, i32
  }
}

</mosaic_0001>

<llo_original>
// kernel: _generator_forward_padded.1
$region0: #{_generator_forward_padded.1}
  #allocation0 [shape = 'u32[]', space=smem, size = 0x4, offset = 0x4, fixed_abs, tag = 'smem constant byte address 0x4 - core index']
  #allocation1 [shape = 'u32[72,128]{1,0:T(1,128)}', space=vmem, size = 0x9000, scoped, tag = 'internal scratch']
  %s0 = inlined_call_operand.vmem [shape: bf16[16,10], index: 0, kind: input, shape index: {}]
  %s1 = inlined_call_operand.vmem [shape: bf16[10,128], index: 1, kind: input, shape index: {}]
  %s2 = inlined_call_operand.vmem [shape: f32[1,128], index: 2, kind: input, shape index: {}]
  %s3 = inlined_call_operand.vmem [shape: bf16[128,256], index: 3, kind: input, shape index: {}]
  %s4 = inlined_call_operand.vmem [shape: f32[1,256], index: 4, kind: input, shape index: {}]
  %s5 = inlined_call_operand.vmem [shape: bf16[256,96], index: 5, kind: input, shape index: {}]
  %s6 = inlined_call_operand.vmem [shape: f32[1,96], index: 6, kind: input, shape index: {}]
  %s7 = inlined_call_operand.hbm [shape: f32[16,96], index: 7, kind: output, shape index: {}]
  %s8 = sld [smem:[#allocation0]]
  $region38: #{_generator_forward_padded.1} parent=0
    _
  %s10 = ssub.s32 1, %s8
  %s11 = scalar_select 0, %s10, %s8
  $region1: #{_generator_forward_padded.1} parent=0
    #allocation2 [shape = 'u8[8192]{0}', space=vmem, size = 0x2000, scoped, tag = 'output window, operand 0, single buffered']
    #allocation3 [shape = 's32[1]{0}', space=sflag, size = 0x4, scoped, tag = 'scoped memory for _generator_forward_padded.1']
    %12 = vsyncpa [#allocation3], 0
    // Predicated region
    $region2: #{_generator_forward_padded.1} parent=1 // pred_check
      _
    $region3: #{_generator_forward_padded.1} parent=1 // pred_check_branch
      %14 = sbr.rel (0) target = $region5
    $region4: #{_generator_forward_padded.1} parent=1 // pred_region
      _
    $region5: #{_generator_forward_padded.1} parent=1 // pred_fallthru
      _
    // Predicated region
    $region6: #{_generator_forward_padded.1} parent=1 // pred_check
      _
    $region7: #{_generator_forward_padded.1} parent=1 // pred_check_branch
      %16 = sbr.rel (0) target = $region9
    $region8: #{_generator_forward_padded.1} parent=1 // pred_region
      _
    $region9: #{_generator_forward_padded.1} parent=1 // pred_fallthru
      _
    // Predicated region
    $region10: #{_generator_forward_padded.1} parent=1 // pred_check
      _
    $region11: #{_generator_forward_padded.1} parent=1 // pred_check_branch
      %18 = sbr.rel (0) target = $region13
    $region12: #{_generator_forward_padded.1} parent=1 // pred_region
      _
    $region13: #{_generator_forward_padded.1} parent=1 // pred_fallthru
      _
    // Predicated region
    $region14: #{_generator_forward_padded.1} parent=1 // pred_check
      _
    $region15: #{_generator_forward_padded.1} parent=1 // pred_check_branch
      %20 = sbr.rel (0) target = $region17
    $region16: #{_generator_forward_padded.1} parent=1 // pred_region
      _
    $region17: #{_generator_forward_padded.1} parent=1 // pred_fallthru
      _
    // Predicated region
    $region18: #{_generator_forward_padded.1} parent=1 // pred_check
      _
    $region19: #{_generator_forward_padded.1} parent=1 // pred_check_branch
      %22 = sbr.rel (0) target = $region21
    $region20: #{_generator_forward_padded.1} parent=1 // pred_region
      _
    $region21: #{_generator_forward_padded.1} parent=1 // pred_fallthru
      _
    // Predicated region
    $region22: #{_generator_forward_padded.1} parent=1 // pred_check
      _
    $region23: #{_generator_forward_padded.1} parent=1 // pred_check_branch
      %24 = sbr.rel (0) target = $region25
    $region24: #{_generator_forward_padded.1} parent=1 // pred_region
      _
    $region25: #{_generator_forward_padded.1} parent=1 // pred_fallthru
      _
    // Predicated region
    $region26: #{_generator_forward_padded.1} parent=1 // pred_check
      _
    $region27: #{_generator_forward_padded.1} parent=1 // pred_check_branch
      %26 = sbr.rel (0) target = $region29
    $region28: #{_generator_forward_padded.1} parent=1 // pred_region
      _
    $region29: #{_generator_forward_padded.1} parent=1 // pred_fallthru
      _
    %v28 = vld [vmem:[%s0] sm:$0xf]
    %v29 = vld [vmem:[%s0 + $0x4] sm:$0xf]
    %v30 = vld [vmem:[%s1] sm:$0xf]
    %v31 = vld [vmem:[%s1 + $0x4] sm:$0x1]
    %v32 = vld [vmem:[%s2] sm:$0x1]
    %v34 = vperm.slane %v32, 0
    %v38 = vunpack.c.l.b16 %v28
    %v39 = vunpack.c.l.b16 %v29
    %v40 = vpack.c.b16 %v39, %v38
    %v43 = vunpack.c.l.b16 %v30
    %v44 = vunpack.c.l.b16 %v31
    %v45 = vpack.c.b16 %v44, %v43
    %vm46 = vcmask 80896
    %v48 = vsel %vm46, %v40, 0
    %vm50 = vcmask 1044480
    %v52 = vsel %vm50, %v45, 0
    %54 = vmatpush.bf16.msra.mxu0 0
    %55 = vmatpush.bf16.msra.mxu0 0
    %56 = vmatpush.bf16.msra.mxu0 0
    %57 = vmatpush.bf16.msra.mxu0 0
    %58 = vmatpush.bf16.msra.mxu0 0
    %59 = vmatpush.bf16.msra.mxu0 0
    %60 = vmatpush.bf16.msra.mxu0 0
    %61 = vmatpush.bf16.msra.mxu0 %v52
    %62 = vmatmul.bf16.gmra.mxu0 %v48
    %v63 = vpop.f32.mrf.mxu0
    %v64 = vadd.f32 %v34, %v63
    %v65 = vpop.f32.mrf.mxu0
    %v66 = vadd.f32 %v34, %v65
    %67 = vdwg.mxu0
    %v68 = vmax.f32 %v64, 0.0
    %v69 = vmax.f32 %v66, 0.0
    %v70 = vpack.c.bf16 %v69, %v68
    %v71 = vld [vmem:[%s3] sm:$0xff]
    %v72 = vld [vmem:[%s3 + $0x8] sm:$0xff]
    %v73 = vld [vmem:[%s3 + $0x10] sm:$0xff]
    %v74 = vld [vmem:[%s3 + $0x18] sm:$0xff]
    %v75 = vld [vmem:[%s3 + $0x20] sm:$0xff]
    %v76 = vld [vmem:[%s3 + $0x28] sm:$0xff]
    %v77 = vld [vmem:[%s3 + $0x30] sm:$0xff]
    %v78 = vld [vmem:[%s3 + $0x38] sm:$0xff]
    %v79 = vld [vmem:[%s3 + $0x40] sm:$0xff]
    %v80 = vld [vmem:[%s3 + $0x48] sm:$0xff]
    %v81 = vld [vmem:[%s3 + $0x50] sm:$0xff]
    %v82 = vld [vmem:[%s3 + $0x58] sm:$0xff]
    %v83 = vld [vmem:[%s3 + $0x60] sm:$0xff]
    %v84 = vld [vmem:[%s3 + $0x68] sm:$0xff]
    %v85 = vld [vmem:[%s3 + $0x70] sm:$0xff]
    %v86 = vld [vmem:[%s3 + $0x78] sm:$0xff]
    %v87 = vld [vmem:[%s4] sm:$0x3]
    %v89 = vperm.slane %v87, 0
    %v90 = vperm.slane %v87, 1
    %v109 = vunpack.c.l.b16 %v71
    %v110 = vunpack.c.h.b16 %v71
    %v111 = vunpack.c.l.b16 %v72
    %v112 = vunpack.c.h.b16 %v72
    %v113 = vunpack.c.l.b16 %v73
    %v114 = vunpack.c.h.b16 %v73
    %v115 = vunpack.c.l.b16 %v74
    %v116 = vunpack.c.h.b16 %v74
    %v117 = vunpack.c.l.b16 %v75
    %v118 = vunpack.c.h.b16 %v75
    %v119 = vunpack.c.l.b16 %v76
    %v120 = vunpack.c.h.b16 %v76
    %v121 = vunpack.c.l.b16 %v77
    %v122 = vunpack.c.h.b16 %v77
    %v123 = vunpack.c.l.b16 %v78
    %v124 = vunpack.c.h.b16 %v78
    %v125 = vunpack.c.l.b16 %v79
    %v126 = vunpack.c.h.b16 %v79
    %v127 = vunpack.c.l.b16 %v80
    %v128 = vunpack.c.h.b16 %v80
    %v129 = vunpack.c.l.b16 %v81
    %v130 = vunpack.c.h.b16 %v81
    %v131 = vunpack.c.l.b16 %v82
    %v132 = vunpack.c.h.b16 %v82
    %v133 = vunpack.c.l.b16 %v83
    %v134 = vunpack.c.h.b16 %v83
    %v135 = vunpack.c.l.b16 %v84
    %v136 = vunpack.c.h.b16 %v84
    %v137 = vunpack.c.l.b16 %v85
    %v138 = vunpack.c.h.b16 %v85
    %v139 = vunpack.c.l.b16 %v86
    %v140 = vunpack.c.h.b16 %v86
    %v141 = vpack.c.b16 %v111, %v109
    %v142 = vpack.c.b16 %v112, %v110
    %v143 = vpack.c.b16 %v115, %v113
    %v144 = vpack.c.b16 %v116, %v114
    %v145 = vpack.c.b16 %v119, %v117
    %v146 = vpack.c.b16 %v120, %v118
    %v147 = vpack.c.b16 %v123, %v121
    %v148 = vpack.c.b16 %v124, %v122
    %v149 = vpack.c.b16 %v127, %v125
    %v150 = vpack.c.b16 %v128, %v126
    %v151 = vpack.c.b16 %v131, %v129
    %v152 = vpack.c.b16 %v132, %v130
    %v153 = vpack.c.b16 %v135, %v133
    %v154 = vpack.c.b16 %v136, %v134
    %v155 = vpack.c.b16 %v139, %v137
    %v156 = vpack.c.b16 %v140, %v138
    %173 = vmatpush.bf16.msra.mxu0 %v155
    %174 = vmatpush.bf16.msra.mxu0 %v153
    %175 = vmatpush.bf16.msra.mxu0 %v151
    %176 = vmatpush.bf16.msra.mxu0 %v149
    %177 = vmatpush.bf16.msra.mxu0 %v147
    %178 = vmatpush.bf16.msra.mxu0 %v145
    %179 = vmatpush.bf16.msra.mxu0 %v143
    %180 = vmatpush.bf16.msra.mxu0 %v141
    %181 = vmatmul.bf16.gmra.mxu0 %v70
    %v182 = vpop.f32.mrf.mxu0
    %v183 = vadd.f32 %v89, %v182
    %v184 = vpop.f32.mrf.mxu0
    %v185 = vadd.f32 %v89, %v184
    %186 = vdwg.mxu0
    %187 = vmatpush.bf16.msra.mxu0 %v156
    %188 = vmatpush.bf16.msra.mxu0 %v154
    %189 = vmatpush.bf16.msra.mxu0 %v152
    %190 = vmatpush.bf16.msra.mxu0 %v150
    %191 = vmatpush.bf16.msra.mxu0 %v148
    %192 = vmatpush.bf16.msra.mxu0 %v146
    %193 = vmatpush.bf16.msra.mxu0 %v144
    %194 = vmatpush.bf16.msra.mxu0 %v142
    %195 = vmatmul.bf16.gmra.mxu0 %v70
    %v196 = vpop.f32.mrf.mxu0
    %v197 = vadd.f32 %v90, %v196
    %v198 = vpop.f32.mrf.mxu0
    %v199 = vadd.f32 %v90, %v198
    %200 = vdwg.mxu0
    %v201 = vmax.f32 %v183, 0.0
    %v202 = vmax.f32 %v197, 0.0
    %v203 = vmax.f32 %v185, 0.0
    %v204 = vmax.f32 %v199, 0.0
    %v205 = vpack.c.bf16 %v203, %v201
    %v206 = vpack.c.bf16 %v204, %v202
    %v207 = vld [vmem:[%s5] sm:$0xf]
    %v208 = vld [vmem:[%s5 + $0x4] sm:$0xf]
    %v209 = vld [vmem:[%s5 + $0x8] sm:$0xf]
    %v210 = vld [vmem:[%s5 + $0xc] sm:$0xf]
    %v211 = vld [vmem:[%s5 + $0x10] sm:$0xf]
    %v212 = vld [vmem:[%s5 + $0x14] sm:$0xf]
    %v213 = vld [vmem:[%s5 + $0x18] sm:$0xf]
    %v214 = vld [vmem:[%s5 + $0x1c] sm:$0xf]
    %v215 = vld [vmem:[%s5 + $0x20] sm:$0xf]
    %v216 = vld [vmem:[%s5 + $0x24] sm:$0xf]
    %v217 = vld [vmem:[%s5 + $0x28] sm:$0xf]
    %v218 = vld [vmem:[%s5 + $0x2c] sm:$0xf]
    %v219 = vld [vmem:[%s5 + $0x30] sm:$0xf]
    %v220 = vld [vmem:[%s5 + $0x34] sm:$0xf]
    %v221 = vld [vmem:[%s5 + $0x38] sm:$0xf]
    %v222 = vld [vmem:[%s5 + $0x3c] sm:$0xf]
    %v223 = vld [vmem:[%s5 + $0x40] sm:$0xf]
    %v224 = vld [vmem:[%s5 + $0x44] sm:$0xf]
    %v225 = vld [vmem:[%s5 + $0x48] sm:$0xf]
    %v226 = vld [vmem:[%s5 + $0x4c] sm:$0xf]
    %v227 = vld [vmem:[%s5 + $0x50] sm:$0xf]
    %v228 = vld [vmem:[%s5 + $0x54] sm:$0xf]
    %v229 = vld [vmem:[%s5 + $0x58] sm:$0xf]
    %v230 = vld [vmem:[%s5 + $0x5c] sm:$0xf]
    %v231 = vld [vmem:[%s5 + $0x60] sm:$0xf]
    %v232 = vld [vmem:[%s5 + $0x64] sm:$0xf]
    %v233 = vld [vmem:[%s5 + $0x68] sm:$0xf]
    %v234 = vld [vmem:[%s5 + $0x6c] sm:$0xf]
    %v235 = vld [vmem:[%s5 + $0x70] sm:$0xf]
    %v236 = vld [vmem:[%s5 + $0x74] sm:$0xf]
    %v237 = vld [vmem:[%s5 + $0x78] sm:$0xf]
    %v238 = vld [vmem:[%s5 + $0x7c] sm:$0xf]
    %v239 = vld [vmem:[%s6] sm:$0x1]
    %v241 = vperm.slane %v239, 0
    %v275 = vunpack.c.l.b16 %v207
    %v276 = vunpack.c.l.b16 %v208
    %v277 = vunpack.c.l.b16 %v209
    %v278 = vunpack.c.l.b16 %v210
    %v279 = vunpack.c.l.b16 %v211
    %v280 = vunpack.c.l.b16 %v212
    %v281 = vunpack.c.l.b16 %v213
    %v282 = vunpack.c.l.b16 %v214
    %v283 = vunpack.c.l.b16 %v215
    %v284 = vunpack.c.l.b16 %v216
    %v285 = vunpack.c.l.b16 %v217
    %v286 = vunpack.c.l.b16 %v218
    %v287 = vunpack.c.l.b16 %v219
    %v288 = vunpack.c.l.b16 %v220
    %v289 = vunpack.c.l.b16 %v221
    %v290 = vunpack.c.l.b16 %v222
    %v291 = vunpack.c.l.b16 %v223
    %v292 = vunpack.c.l.b16 %v224
    %v293 = vunpack.c.l.b16 %v225
    %v294 = vunpack.c.l.b16 %v226
    %v295 = vunpack.c.l.b16 %v227
    %v296 = vunpack.c.l.b16 %v228
    %v297 = vunpack.c.l.b16 %v229
    %v298 = vunpack.c.l.b16 %v230
    %v299 = vunpack.c.l.b16 %v231
    %v300 = vunpack.c.l.b16 %v232
    %v301 = vunpack.c.l.b16 %v233
    %v302 = vunpack.c.l.b16 %v234
    %v303 = vunpack.c.l.b16 %v235
    %v304 = vunpack.c.l.b16 %v236
    %v305 = vunpack.c.l.b16 %v237
    %v306 = vunpack.c.l.b16 %v238
    %v307 = vpack.c.b16 %v276, %v275
    %v308 = vpack.c.b16 %v278, %v277
    %v309 = vpack.c.b16 %v280, %v279
    %v310 = vpack.c.b16 %v282, %v281
    %v311 = vpack.c.b16 %v284, %v283
    %v312 = vpack.c.b16 %v286, %v285
    %v313 = vpack.c.b16 %v288, %v287
    %v314 = vpack.c.b16 %v290, %v289
    %v315 = vpack.c.b16 %v292, %v291
    %v316 = vpack.c.b16 %v294, %v293
    %v317 = vpack.c.b16 %v296, %v295
    %v318 = vpack.c.b16 %v298, %v297
    %v319 = vpack.c.b16 %v300, %v299
    %v320 = vpack.c.b16 %v302, %v301
    %v321 = vpack.c.b16 %v304, %v303
    %v322 = vpack.c.b16 %v306, %v305
    %339 = vmatpush.bf16.msra.mxu0 %v314
    %340 = vmatpush.bf16.msra.mxu0 %v313
    %341 = vmatpush.bf16.msra.mxu0 %v312
    %342 = vmatpush.bf16.msra.mxu0 %v311
    %343 = vmatpush.bf16.msra.mxu0 %v310
    %344 = vmatpush.bf16.msra.mxu0 %v309
    %345 = vmatpush.bf16.msra.mxu0 %v308
    %346 = vmatpush.bf16.msra.mxu0 %v307
    %347 = vmatmul.bf16.gmra.mxu0 %v205
    %v348 = vpop.f32.mrf.mxu0
    %v349 = vadd.f32 %v241, %v348
    %v350 = vpop.f32.mrf.mxu0
    %v351 = vadd.f32 %v241, %v350
    %352 = vdwg.mxu0
    %353 = vmatpush.bf16.msra.mxu0 %v322
    %354 = vmatpush.bf16.msra.mxu0 %v321
    %355 = vmatpush.bf16.msra.mxu0 %v320
    %356 = vmatpush.bf16.msra.mxu0 %v319
    %357 = vmatpush.bf16.msra.mxu0 %v318
    %358 = vmatpush.bf16.msra.mxu0 %v317
    %359 = vmatpush.bf16.msra.mxu0 %v316
    %360 = vmatpush.bf16.msra.mxu0 %v315
    %361 = vmatmul.bf16.gmra.mxu0 %v206
    %v362 = vpop.f32.mrf.mxu0
    %v363 = vadd.f32 %v349, %v362
    %v364 = vpop.f32.mrf.mxu0
    %v365 = vadd.f32 %v351, %v364
    %366 = vdwg.mxu0
    %v367 = vsub.f32 0.0, %v363
    %v368 = vsub.f32 0.0, %v365
    %v369 = vmul.f32 %v367, 1.442695
    %v370 = vpow.pop %v369
    %v371 = vmul.f32 %v368, 1.442695
    %v372 = vpow.pop %v371
    %v373 = vadd.f32 %v370, 1.0
    %v374 = vadd.f32 %v372, 1.0
    %v375 = vrcp.pop %v373
    %v376 = vrcp.pop %v374
    %vm377 = vcmask 785408
    %378 = vst.msk [vmem:[#allocation2] sm:$0xff] %vm377, %v375
    %379 = vst.msk [vmem:[#allocation2 + $0x8] sm:$0xff] %vm377, %v376
    // Predicated region
    $region30: #{_generator_forward_padded.1} parent=1 // pred_check
      _
    $region31: #{_generator_forward_padded.1} parent=1 // pred_check_branch
      %381 = sbr.rel (0) target = $region33
    $region32: #{_generator_forward_padded.1} parent=1 // pred_region
      %383 = vsyncadd [#allocation3], 0
      %s384 = sshll.u32 [#allocation2], 4
      %s385 = int_to_ptr.vmem [resolvable:$true] %s384
      %s386 = sshll.u32 %s7, 4
      %s387 = int_to_ptr.hbm [resolvable:$true] %s386
      %392 = dma.vmem_to_hbm [thread:$0]  %s385, 256, %s387, [#allocation3], 128, 128, 8
    $region33: #{_generator_forward_padded.1} parent=1 // pred_fallthru
      _
    // Predicated region
    $region34: #{_generator_forward_padded.1} parent=1 // pred_check
      _
    $region35: #{_generator_forward_padded.1} parent=1 // pred_check_branch
      %394 = sbr.rel (0) target = $region37
    $region36: #{_generator_forward_padded.1} parent=1 // pred_region
      %396 = dma.done [#allocation3], 256
    $region37: #{_generator_forward_padded.1} parent=1 // pred_fallthru
      _
    %397 = vsyncpa [#allocation3], 1

</llo_original>
